<compile_context>
chip_gen: v7x
topology: tpu7x:2x2x1
jax: 0.10.0
libtpu: 0.0.40
codegen_flags: <defaults>
</compile_context>

<pallas_src>
import math
import numpy as np
import jax
import jax.numpy as jnp
from jax import lax
from jax.experimental import pallas as pl
from jax.experimental.pallas import tpu as pltpu

_LANES = 128
_SUBLANES = 8


# ----------------------------------------------------------------------------
# Host-side schedule construction (module __init__ equivalent, plain numpy)
# ----------------------------------------------------------------------------
def cosine_beta_schedule(timesteps, s=0.008, raise_to_power: float = 1):
    steps = timesteps + 2
    x = np.linspace(0, steps, steps)
    alphas_cumprod = np.cos((x / steps + s) / (1 + s) * np.pi * 0.5) ** 2
    alphas_cumprod = alphas_cumprod / alphas_cumprod[0]
    betas = 1 - alphas_cumprod[1:] / alphas_cumprod[:-1]
    betas = np.clip(betas, a_min=0, a_max=0.999)
    alphas = 1.0 - betas
    alphas_cumprod = np.cumprod(alphas, axis=0)
    if raise_to_power != 1:
        alphas_cumprod = np.power(alphas_cumprod, raise_to_power)
    return alphas_cumprod


def clip_noise_schedule(alphas2, clip_value=0.001):
    alphas2 = np.concatenate([np.ones(1), alphas2], axis=0)
    alphas_step = alphas2[1:] / alphas2[:-1]
    alphas_step = np.clip(alphas_step, a_min=clip_value, a_max=1.0)
    alphas2 = np.cumprod(alphas_step, axis=0)
    return alphas2


def polynomial_schedule(timesteps: int, s=0.0001, power=3.0):
    steps = timesteps + 1
    x = np.linspace(0, steps, steps)
    alphas2 = (1 - np.power(x / steps, power)) ** 2
    alphas2 = clip_noise_schedule(alphas2, clip_value=0.001)
    precision = 1 - 2 * s
    alphas2 = precision * alphas2 + s
    return alphas2


def build_gamma(noise_schedule: str, timesteps: int, precision: float) -> np.ndarray:
    if noise_schedule == 'cosine':
        alphas2 = cosine_beta_schedule(timesteps)
    elif 'polynomial' in noise_schedule:
        splits = noise_schedule.split('_')
        assert len(splits) == 2
        power = float(splits[1])
        alphas2 = polynomial_schedule(timesteps, s=precision, power=power)
    else:
        raise ValueError(noise_schedule)
    sigmas2 = 1 - alphas2
    log_alphas2 = np.log(alphas2)
    log_sigmas2 = np.log(sigmas2)
    log_alphas2_to_sigmas2 = log_alphas2 - log_sigmas2
    gamma = (-log_alphas2_to_sigmas2).astype(np.float32)   # shape (timesteps+1,)
    return gamma


# ----------------------------------------------------------------------------
# Helpers
# ----------------------------------------------------------------------------
def _round_up(x: int, m: int) -> int:
    return ((x + m - 1) // m) * m


def _cdiv(a: int, b: int) -> int:
    return -(-a // b)


def _tensorcores_per_chip() -> int:
    """Best-effort detection of TensorCores per chip (v7x / v4 / v3 / v5p = 2)."""
    try:
        kind = jax.devices()[0].device_kind.lower()
    except Exception:
        return 1
    for tag in ("v7", "7x", "v4", "v3", "v5p"):
        if tag in kind:
            return 2
    return 1


# ----------------------------------------------------------------------------
# Pallas kernel: out[r, l] = gamma[clip(round(t[r, l] * T), 0, T)]
# Batch is lane-dense: block shape (rows, 128). gamma lives in SMEM; the
# lookup is a chain of vector compare/selects over the table axis (VALU),
# with the selected gamma value coming from a scalar SMEM read per entry.
# ----------------------------------------------------------------------------
def _make_lookup_kernel(timesteps: int, table_len: int, static_unroll_max: int = 256):
    def kernel(t_ref, gamma_ref, out_ref):
        # Cast in-register (free on the VPU under existing slack).
        t = t_ref[...].astype(jnp.float32)                           # (rows, 128)
        # torch.round is round-half-to-even; jnp.round matches.
        t_int = jnp.round(t * float(timesteps)).astype(jnp.int32)
        # Intentional deviation from the PyTorch reference: clamp keeps any
        # out-of-range t from indexing outside the gamma table.
        t_int = jnp.clip(t_int, 0, timesteps)

        acc0 = jnp.zeros_like(t)
        if table_len <= static_unroll_max:
            # Small table: fully unrolled select chain (2 VALU ops per entry
            # per (8,128) vreg; static SMEM scalar reads).
            acc = acc0
            for j in range(table_len):
                acc = jnp.where(t_int == j, gamma_ref[j], acc)
        else:
            # Larger table: scf.for over the table axis; carry stays in vregs.
            def body(j, acc):
                return jnp.where(t_int == j, gamma_ref[j], acc)
            acc = lax.fori_loop(0, table_len, body, acc0)

        out_ref[...] = acc                                           # lane-dense store
    return kernel


class PredefinedNoiseSchedulePallas:
    """JAX/Pallas port of PredefinedNoiseSchedule (non-learned lookup)."""

    def __init__(self, noise_schedule: str, timesteps: int, precision: float,
                 *, max_rows_per_block: int = 2048):
        self.timesteps = timesteps
        gamma_np = build_gamma(noise_schedule, timesteps, precision)  # (T+1,)
        self.table_len = gamma_np.shape[0]
        self.gamma = jnp.asarray(gamma_np)                            # (T+1,) f32 (SMEM input)
        # 2048 rows * 128 lanes * 4 B = 1 MiB per buffer; with in+out double
        # buffering ~4 MiB -> safe under v5e 16 MiB / v6e 32 MiB / v7x 32 MiB
        # scoped-VMEM defaults.
        self.max_rows_per_block = max(_SUBLANES,
                                      (max_rows_per_block // _SUBLANES) * _SUBLANES)
        self._ncores = _tensorcores_per_chip()
        self._kernel = _make_lookup_kernel(timesteps, self.table_len)
        # jit once: retraces only on new input shapes.
        self._forward = jax.jit(self._forward_impl)

    # -- traced under jax.jit -------------------------------------------------
    def _forward_impl(self, t, gamma):
        B = t.shape[0]
        t_flat = t.reshape(-1)
        if t_flat.dtype != jnp.float32:
            # Only non-f32 inputs pay this wrapper cast; f32 inputs go straight in.
            t_flat = t_flat.astype(jnp.float32)

        # Pack the batch lane-dense: rows of 128 lanes, rows aligned to 8 sublanes.
        rows = max(_SUBLANES, _round_up(_cdiv(B, _LANES), _SUBLANES))

        # Block sizing: single big block on single-TC parts; >= 2 parallel
        # blocks on 2-TC parts once there is enough work to split.
        if self._ncores > 1 and rows >= 2 * _SUBLANES:
            rows_block = _round_up(_cdiv(rows, self._ncores), _SUBLANES)
        else:
            rows_block = rows
        rows_block = min(rows_block, self.max_rows_per_block)
        nb = _cdiv(rows, rows_block)

        rows_padded = nb * rows_block
        n_padded = rows_padded * _LANES
        if n_padded != B:
            # Padded elements read gamma[0] and are sliced away below.
            t_flat = jnp.pad(t_flat, (0, n_padded - B))
        t2d = t_flat.reshape(rows_padded, _LANES)

        out2d = pl.pallas_call(
            self._kernel,
            out_shape=jax.ShapeDtypeStruct((rows_padded, _LANES), jnp.float32),
            grid=(nb,),
            in_specs=[
                pl.BlockSpec((rows_block, _LANES), lambda i: (i, 0)),
                pl.BlockSpec(memory_space=pltpu.MemorySpace.SMEM),   # gamma table
            ],
            out_specs=pl.BlockSpec((rows_block, _LANES), lambda i: (i, 0)),
            compiler_params=pltpu.CompilerParams(
                dimension_semantics=("parallel",)),
        )(t2d, gamma)

        return out2d.reshape(-1)[:B].reshape(B, 1)

    # -- public API -----------------------------------------------------------
    def __call__(self, t: jax.Array) -> jax.Array:
        # t: float array of shape (B, 1), values in [0, 1]
        assert t.ndim == 2 and t.shape[1] == 1
        return self._forward(t, self.gamma)


# ----------------------------------------------------------------------------
# Test
# ----------------------------------------------------------------------------
if __name__ == "__main__":
    key = jax.random.PRNGKey(0)

    # --- small-B, small table (static-unroll select chain, single block) -----
    timesteps = 100
    sched = PredefinedNoiseSchedulePallas("polynomial_2", timesteps, precision=1e-5)
    B = 8
    t = jax.random.uniform(key, (B, 1), dtype=jnp.float32)          # t in [0, 1)

    out = jax.block_until_ready(sched(t))
    t_int = jnp.clip(jnp.round(t * timesteps).astype(jnp.int32), 0, timesteps)
    ref = sched.gamma[t_int[:, 0]][:, None]
    assert out.shape == (B, 1)
    assert out.dtype == jnp.float32
    np.testing.assert_allclose(np.asarray(out), np.asarray(ref), rtol=1e-6, atol=1e-6)

    # Call again to confirm the cached/jitted path is reused (no retrace error).
    out2 = jax.block_until_ready(sched(t))
    np.testing.assert_allclose(np.asarray(out2), np.asarray(ref), rtol=1e-6, atol=1e-6)

    # --- larger table (fori_loop over table axis, dynamic SMEM scalar reads) --
    timesteps_big = 1000
    sched_big = PredefinedNoiseSchedulePallas("cosine", timesteps_big, precision=1e-5)
    t_b = jax.random.uniform(jax.random.PRNGKey(2), (B, 1), dtype=jnp.float32)
    out_b = jax.block_until_ready(sched_big(t_b))
    tb_int = jnp.clip(jnp.round(t_b * timesteps_big).astype(jnp.int32), 0, timesteps_big)
    ref_b = sched_big.gamma[tb_int[:, 0]][:, None]
    np.testing.assert_allclose(np.asarray(out_b), np.asarray(ref_b),
                               rtol=1e-6, atol=1e-6)

    # --- gridded multi-block path (forced small block; padding + slice-back) --
    sched_tiled = PredefinedNoiseSchedulePallas(
        "polynomial_2", timesteps, precision=1e-5, max_rows_per_block=8)
    B2 = 2000   # -> 16 rows of 128 lanes, 2 blocks, 48 padded elements
    t2 = jax.random.uniform(jax.random.PRNGKey(1), (B2, 1), dtype=jnp.float32)
    out_t = jax.block_until_ready(sched_tiled(t2))
    t2_int = jnp.clip(jnp.round(t2 * timesteps).astype(jnp.int32), 0, timesteps)
    ref_t = sched_tiled.gamma[t2_int[:, 0]][:, None]
    assert out_t.shape == (B2, 1)
    np.testing.assert_allclose(np.asarray(out_t), np.asarray(ref_t),
                               rtol=1e-6, atol=1e-6)

    print("KERNEL_OK")
</pallas_src>

<mosaic_0001>
module attributes {stable_mosaic.version = 11 : i64} {
  func.func @kernel(%arg0: i32, %arg1: memref<8x128xf32, #tpu.memory_space<vmem>>, %arg2: memref<101xf32, #tpu.memory_space<smem>>, %arg3: memref<8x128xf32, #tpu.memory_space<vmem>>) attributes {dimension_semantics = [#tpu.dimension_semantics<parallel>], iteration_bounds = array<i64: 1>, scalar_prefetch = 0 : i64, scratch_operands = 0 : i64, tpu.core_type = #tpu.core_type<tc>, window_params = [{transform_indices = @transform_0, window_bounds = array<i64: 8, 128>}, {transform_indices = @transform_1, window_bounds = array<i64: 101>}, {transform_indices = @transform_2, window_bounds = array<i64: 8, 128>}]} {
    %c0 = arith.constant 0 : index
    %c0_0 = arith.constant 0 : index
    %0 = vector.load %arg1[%c0, %c0_0] : memref<8x128xf32, #tpu.memory_space<vmem>>, vector<8x128xf32>
    %cst = arith.constant 1.000000e+02 : f32
    %1 = vector.broadcast %cst : f32 to vector<8x128xf32>
    %2 = arith.mulf %0, %1 : vector<8x128xf32>
    %3 = math.roundeven %2 : vector<8x128xf32>
    %4 = arith.fptosi %3 : vector<8x128xf32> to vector<8x128xi32>
    %c0_i32 = arith.constant 0 : i32
    %c100_i32 = arith.constant 100 : i32
    %5 = vector.broadcast %c0_i32 : i32 to vector<8x128xi32>
    %6 = arith.maxsi %5, %4 : vector<8x128xi32>
    %7 = vector.broadcast %c100_i32 : i32 to vector<8x128xi32>
    %8 = arith.minsi %7, %6 : vector<8x128xi32>
    %cst_1 = arith.constant 0.000000e+00 : f32
    %9 = vector.broadcast %cst_1 : f32 to vector<8x128xf32>
    %c0_i32_2 = arith.constant 0 : i32
    %10 = vector.broadcast %c0_i32_2 : i32 to vector<8x128xi32>
    %11 = arith.cmpi eq, %8, %10 : vector<8x128xi32>
    %c0_3 = arith.constant 0 : index
    %12 = memref.load %arg2[%c0_3] : memref<101xf32, #tpu.memory_space<smem>>
    %13 = vector.broadcast %12 : f32 to vector<8x128xf32>
    %14 = arith.select %11, %13, %9 : vector<8x128xi1>, vector<8x128xf32>
    %c1_i32 = arith.constant 1 : i32
    %15 = vector.broadcast %c1_i32 : i32 to vector<8x128xi32>
    %16 = arith.cmpi eq, %8, %15 : vector<8x128xi32>
    %c1 = arith.constant 1 : index
    %17 = memref.load %arg2[%c1] : memref<101xf32, #tpu.memory_space<smem>>
    %18 = vector.broadcast %17 : f32 to vector<8x128xf32>
    %19 = arith.select %16, %18, %14 : vector<8x128xi1>, vector<8x128xf32>
    %c2_i32 = arith.constant 2 : i32
    %20 = vector.broadcast %c2_i32 : i32 to vector<8x128xi32>
    %21 = arith.cmpi eq, %8, %20 : vector<8x128xi32>
    %c2 = arith.constant 2 : index
    %22 = memref.load %arg2[%c2] : memref<101xf32, #tpu.memory_space<smem>>
    %23 = vector.broadcast %22 : f32 to vector<8x128xf32>
    %24 = arith.select %21, %23, %19 : vector<8x128xi1>, vector<8x128xf32>
    %c3_i32 = arith.constant 3 : i32
    %25 = vector.broadcast %c3_i32 : i32 to vector<8x128xi32>
    %26 = arith.cmpi eq, %8, %25 : vector<8x128xi32>
    %c3 = arith.constant 3 : index
    %27 = memref.load %arg2[%c3] : memref<101xf32, #tpu.memory_space<smem>>
    %28 = vector.broadcast %27 : f32 to vector<8x128xf32>
    %29 = arith.select %26, %28, %24 : vector<8x128xi1>, vector<8x128xf32>
    %c4_i32 = arith.constant 4 : i32
    %30 = vector.broadcast %c4_i32 : i32 to vector<8x128xi32>
    %31 = arith.cmpi eq, %8, %30 : vector<8x128xi32>
    %c4 = arith.constant 4 : index
    %32 = memref.load %arg2[%c4] : memref<101xf32, #tpu.memory_space<smem>>
    %33 = vector.broadcast %32 : f32 to vector<8x128xf32>
    %34 = arith.select %31, %33, %29 : vector<8x128xi1>, vector<8x128xf32>
    %c5_i32 = arith.constant 5 : i32
    %35 = vector.broadcast %c5_i32 : i32 to vector<8x128xi32>
    %36 = arith.cmpi eq, %8, %35 : vector<8x128xi32>
    %c5 = arith.constant 5 : index
    %37 = memref.load %arg2[%c5] : memref<101xf32, #tpu.memory_space<smem>>
    %38 = vector.broadcast %37 : f32 to vector<8x128xf32>
    %39 = arith.select %36, %38, %34 : vector<8x128xi1>, vector<8x128xf32>
    %c6_i32 = arith.constant 6 : i32
    %40 = vector.broadcast %c6_i32 : i32 to vector<8x128xi32>
    %41 = arith.cmpi eq, %8, %40 : vector<8x128xi32>
    %c6 = arith.constant 6 : index
    %42 = memref.load %arg2[%c6] : memref<101xf32, #tpu.memory_space<smem>>
    %43 = vector.broadcast %42 : f32 to vector<8x128xf32>
    %44 = arith.select %41, %43, %39 : vector<8x128xi1>, vector<8x128xf32>
    %c7_i32 = arith.constant 7 : i32
    %45 = vector.broadcast %c7_i32 : i32 to vector<8x128xi32>
    %46 = arith.cmpi eq, %8, %45 : vector<8x128xi32>
    %c7 = arith.constant 7 : index
    %47 = memref.load %arg2[%c7] : memref<101xf32, #tpu.memory_space<smem>>
    %48 = vector.broadcast %47 : f32 to vector<8x128xf32>
    %49 = arith.select %46, %48, %44 : vector<8x128xi1>, vector<8x128xf32>
    %c8_i32 = arith.constant 8 : i32
    %50 = vector.broadcast %c8_i32 : i32 to vector<8x128xi32>
    %51 = arith.cmpi eq, %8, %50 : vector<8x128xi32>
    %c8 = arith.constant 8 : index
    %52 = memref.load %arg2[%c8] : memref<101xf32, #tpu.memory_space<smem>>
    %53 = vector.broadcast %52 : f32 to vector<8x128xf32>
    %54 = arith.select %51, %53, %49 : vector<8x128xi1>, vector<8x128xf32>
    %c9_i32 = arith.constant 9 : i32
    %55 = vector.broadcast %c9_i32 : i32 to vector<8x128xi32>
    %56 = arith.cmpi eq, %8, %55 : vector<8x128xi32>
    %c9 = arith.constant 9 : index
    %57 = memref.load %arg2[%c9] : memref<101xf32, #tpu.memory_space<smem>>
    %58 = vector.broadcast %57 : f32 to vector<8x128xf32>
    %59 = arith.select %56, %58, %54 : vector<8x128xi1>, vector<8x128xf32>
    %c10_i32 = arith.constant 10 : i32
    %60 = vector.broadcast %c10_i32 : i32 to vector<8x128xi32>
    %61 = arith.cmpi eq, %8, %60 : vector<8x128xi32>
    %c10 = arith.constant 10 : index
    %62 = memref.load %arg2[%c10] : memref<101xf32, #tpu.memory_space<smem>>
    %63 = vector.broadcast %62 : f32 to vector<8x128xf32>
    %64 = arith.select %61, %63, %59 : vector<8x128xi1>, vector<8x128xf32>
    %c11_i32 = arith.constant 11 : i32
    %65 = vector.broadcast %c11_i32 : i32 to vector<8x128xi32>
    %66 = arith.cmpi eq, %8, %65 : vector<8x128xi32>
    %c11 = arith.constant 11 : index
    %67 = memref.load %arg2[%c11] : memref<101xf32, #tpu.memory_space<smem>>
    %68 = vector.broadcast %67 : f32 to vector<8x128xf32>
    %69 = arith.select %66, %68, %64 : vector<8x128xi1>, vector<8x128xf32>
    %c12_i32 = arith.constant 12 : i32
    %70 = vector.broadcast %c12_i32 : i32 to vector<8x128xi32>
    %71 = arith.cmpi eq, %8, %70 : vector<8x128xi32>
    %c12 = arith.constant 12 : index
    %72 = memref.load %arg2[%c12] : memref<101xf32, #tpu.memory_space<smem>>
    %73 = vector.broadcast %72 : f32 to vector<8x128xf32>
    %74 = arith.select %71, %73, %69 : vector<8x128xi1>, vector<8x128xf32>
    %c13_i32 = arith.constant 13 : i32
    %75 = vector.broadcast %c13_i32 : i32 to vector<8x128xi32>
    %76 = arith.cmpi eq, %8, %75 : vector<8x128xi32>
    %c13 = arith.constant 13 : index
    %77 = memref.load %arg2[%c13] : memref<101xf32, #tpu.memory_space<smem>>
    %78 = vector.broadcast %77 : f32 to vector<8x128xf32>
    %79 = arith.select %76, %78, %74 : vector<8x128xi1>, vector<8x128xf32>
    %c14_i32 = arith.constant 14 : i32
    %80 = vector.broadcast %c14_i32 : i32 to vector<8x128xi32>
    %81 = arith.cmpi eq, %8, %80 : vector<8x128xi32>
    %c14 = arith.constant 14 : index
    %82 = memref.load %arg2[%c14] : memref<101xf32, #tpu.memory_space<smem>>
    %83 = vector.broadcast %82 : f32 to vector<8x128xf32>
    %84 = arith.select %81, %83, %79 : vector<8x128xi1>, vector<8x128xf32>
    %c15_i32 = arith.constant 15 : i32
    %85 = vector.broadcast %c15_i32 : i32 to vector<8x128xi32>
    %86 = arith.cmpi eq, %8, %85 : vector<8x128xi32>
    %c15 = arith.constant 15 : index
    %87 = memref.load %arg2[%c15] : memref<101xf32, #tpu.memory_space<smem>>
    %88 = vector.broadcast %87 : f32 to vector<8x128xf32>
    %89 = arith.select %86, %88, %84 : vector<8x128xi1>, vector<8x128xf32>
    %c16_i32 = arith.constant 16 : i32
    %90 = vector.broadcast %c16_i32 : i32 to vector<8x128xi32>
    %91 = arith.cmpi eq, %8, %90 : vector<8x128xi32>
    %c16 = arith.constant 16 : index
    %92 = memref.load %arg2[%c16] : memref<101xf32, #tpu.memory_space<smem>>
    %93 = vector.broadcast %92 : f32 to vector<8x128xf32>
    %94 = arith.select %91, %93, %89 : vector<8x128xi1>, vector<8x128xf32>
    %c17_i32 = arith.constant 17 : i32
    %95 = vector.broadcast %c17_i32 : i32 to vector<8x128xi32>
    %96 = arith.cmpi eq, %8, %95 : vector<8x128xi32>
    %c17 = arith.constant 17 : index
    %97 = memref.load %arg2[%c17] : memref<101xf32, #tpu.memory_space<smem>>
    %98 = vector.broadcast %97 : f32 to vector<8x128xf32>
    %99 = arith.select %96, %98, %94 : vector<8x128xi1>, vector<8x128xf32>
    %c18_i32 = arith.constant 18 : i32
    %100 = vector.broadcast %c18_i32 : i32 to vector<8x128xi32>
    %101 = arith.cmpi eq, %8, %100 : vector<8x128xi32>
    %c18 = arith.constant 18 : index
    %102 = memref.load %arg2[%c18] : memref<101xf32, #tpu.memory_space<smem>>
    %103 = vector.broadcast %102 : f32 to vector<8x128xf32>
    %104 = arith.select %101, %103, %99 : vector<8x128xi1>, vector<8x128xf32>
    %c19_i32 = arith.constant 19 : i32
    %105 = vector.broadcast %c19_i32 : i32 to vector<8x128xi32>
    %106 = arith.cmpi eq, %8, %105 : vector<8x128xi32>
    %c19 = arith.constant 19 : index
    %107 = memref.load %arg2[%c19] : memref<101xf32, #tpu.memory_space<smem>>
    %108 = vector.broadcast %107 : f32 to vector<8x128xf32>
    %109 = arith.select %106, %108, %104 : vector<8x128xi1>, vector<8x128xf32>
    %c20_i32 = arith.constant 20 : i32
    %110 = vector.broadcast %c20_i32 : i32 to vector<8x128xi32>
    %111 = arith.cmpi eq, %8, %110 : vector<8x128xi32>
    %c20 = arith.constant 20 : index
    %112 = memref.load %arg2[%c20] : memref<101xf32, #tpu.memory_space<smem>>
    %113 = vector.broadcast %112 : f32 to vector<8x128xf32>
    %114 = arith.select %111, %113, %109 : vector<8x128xi1>, vector<8x128xf32>
    %c21_i32 = arith.constant 21 : i32
    %115 = vector.broadcast %c21_i32 : i32 to vector<8x128xi32>
    %116 = arith.cmpi eq, %8, %115 : vector<8x128xi32>
    %c21 = arith.constant 21 : index
    %117 = memref.load %arg2[%c21] : memref<101xf32, #tpu.memory_space<smem>>
    %118 = vector.broadcast %117 : f32 to vector<8x128xf32>
    %119 = arith.select %116, %118, %114 : vector<8x128xi1>, vector<8x128xf32>
    %c22_i32 = arith.constant 22 : i32
    %120 = vector.broadcast %c22_i32 : i32 to vector<8x128xi32>
    %121 = arith.cmpi eq, %8, %120 : vector<8x128xi32>
    %c22 = arith.constant 22 : index
    %122 = memref.load %arg2[%c22] : memref<101xf32, #tpu.memory_space<smem>>
    %123 = vector.broadcast %122 : f32 to vector<8x128xf32>
    %124 = arith.select %121, %123, %119 : vector<8x128xi1>, vector<8x128xf32>
    %c23_i32 = arith.constant 23 : i32
    %125 = vector.broadcast %c23_i32 : i32 to vector<8x128xi32>
    %126 = arith.cmpi eq, %8, %125 : vector<8x128xi32>
    %c23 = arith.constant 23 : index
    %127 = memref.load %arg2[%c23] : memref<101xf32, #tpu.memory_space<smem>>
    %128 = vector.broadcast %127 : f32 to vector<8x128xf32>
    %129 = arith.select %126, %128, %124 : vector<8x128xi1>, vector<8x128xf32>
    %c24_i32 = arith.constant 24 : i32
    %130 = vector.broadcast %c24_i32 : i32 to vector<8x128xi32>
    %131 = arith.cmpi eq, %8, %130 : vector<8x128xi32>
    %c24 = arith.constant 24 : index
    %132 = memref.load %arg2[%c24] : memref<101xf32, #tpu.memory_space<smem>>
    %133 = vector.broadcast %132 : f32 to vector<8x128xf32>
    %134 = arith.select %131, %133, %129 : vector<8x128xi1>, vector<8x128xf32>
    %c25_i32 = arith.constant 25 : i32
    %135 = vector.broadcast %c25_i32 : i32 to vector<8x128xi32>
    %136 = arith.cmpi eq, %8, %135 : vector<8x128xi32>
    %c25 = arith.constant 25 : index
    %137 = memref.load %arg2[%c25] : memref<101xf32, #tpu.memory_space<smem>>
    %138 = vector.broadcast %137 : f32 to vector<8x128xf32>
    %139 = arith.select %136, %138, %134 : vector<8x128xi1>, vector<8x128xf32>
    %c26_i32 = arith.constant 26 : i32
    %140 = vector.broadcast %c26_i32 : i32 to vector<8x128xi32>
    %141 = arith.cmpi eq, %8, %140 : vector<8x128xi32>
    %c26 = arith.constant 26 : index
    %142 = memref.load %arg2[%c26] : memref<101xf32, #tpu.memory_space<smem>>
    %143 = vector.broadcast %142 : f32 to vector<8x128xf32>
    %144 = arith.select %141, %143, %139 : vector<8x128xi1>, vector<8x128xf32>
    %c27_i32 = arith.constant 27 : i32
    %145 = vector.broadcast %c27_i32 : i32 to vector<8x128xi32>
    %146 = arith.cmpi eq, %8, %145 : vector<8x128xi32>
    %c27 = arith.constant 27 : index
    %147 = memref.load %arg2[%c27] : memref<101xf32, #tpu.memory_space<smem>>
    %148 = vector.broadcast %147 : f32 to vector<8x128xf32>
    %149 = arith.select %146, %148, %144 : vector<8x128xi1>, vector<8x128xf32>
    %c28_i32 = arith.constant 28 : i32
    %150 = vector.broadcast %c28_i32 : i32 to vector<8x128xi32>
    %151 = arith.cmpi eq, %8, %150 : vector<8x128xi32>
    %c28 = arith.constant 28 : index
    %152 = memref.load %arg2[%c28] : memref<101xf32, #tpu.memory_space<smem>>
    %153 = vector.broadcast %152 : f32 to vector<8x128xf32>
    %154 = arith.select %151, %153, %149 : vector<8x128xi1>, vector<8x128xf32>
    %c29_i32 = arith.constant 29 : i32
    %155 = vector.broadcast %c29_i32 : i32 to vector<8x128xi32>
    %156 = arith.cmpi eq, %8, %155 : vector<8x128xi32>
    %c29 = arith.constant 29 : index
    %157 = memref.load %arg2[%c29] : memref<101xf32, #tpu.memory_space<smem>>
    %158 = vector.broadcast %157 : f32 to vector<8x128xf32>
    %159 = arith.select %156, %158, %154 : vector<8x128xi1>, vector<8x128xf32>
    %c30_i32 = arith.constant 30 : i32
    %160 = vector.broadcast %c30_i32 : i32 to vector<8x128xi32>
    %161 = arith.cmpi eq, %8, %160 : vector<8x128xi32>
    %c30 = arith.constant 30 : index
    %162 = memref.load %arg2[%c30] : memref<101xf32, #tpu.memory_space<smem>>
    %163 = vector.broadcast %162 : f32 to vector<8x128xf32>
    %164 = arith.select %161, %163, %159 : vector<8x128xi1>, vector<8x128xf32>
    %c31_i32 = arith.constant 31 : i32
    %165 = vector.broadcast %c31_i32 : i32 to vector<8x128xi32>
    %166 = arith.cmpi eq, %8, %165 : vector<8x128xi32>
    %c31 = arith.constant 31 : index
    %167 = memref.load %arg2[%c31] : memref<101xf32, #tpu.memory_space<smem>>
    %168 = vector.broadcast %167 : f32 to vector<8x128xf32>
    %169 = arith.select %166, %168, %164 : vector<8x128xi1>, vector<8x128xf32>
    %c32_i32 = arith.constant 32 : i32
    %170 = vector.broadcast %c32_i32 : i32 to vector<8x128xi32>
    %171 = arith.cmpi eq, %8, %170 : vector<8x128xi32>
    %c32 = arith.constant 32 : index
    %172 = memref.load %arg2[%c32] : memref<101xf32, #tpu.memory_space<smem>>
    %173 = vector.broadcast %172 : f32 to vector<8x128xf32>
    %174 = arith.select %171, %173, %169 : vector<8x128xi1>, vector<8x128xf32>
    %c33_i32 = arith.constant 33 : i32
    %175 = vector.broadcast %c33_i32 : i32 to vector<8x128xi32>
    %176 = arith.cmpi eq, %8, %175 : vector<8x128xi32>
    %c33 = arith.constant 33 : index
    %177 = memref.load %arg2[%c33] : memref<101xf32, #tpu.memory_space<smem>>
    %178 = vector.broadcast %177 : f32 to vector<8x128xf32>
    %179 = arith.select %176, %178, %174 : vector<8x128xi1>, vector<8x128xf32>
    %c34_i32 = arith.constant 34 : i32
    %180 = vector.broadcast %c34_i32 : i32 to vector<8x128xi32>
    %181 = arith.cmpi eq, %8, %180 : vector<8x128xi32>
    %c34 = arith.constant 34 : index
    %182 = memref.load %arg2[%c34] : memref<101xf32, #tpu.memory_space<smem>>
    %183 = vector.broadcast %182 : f32 to vector<8x128xf32>
    %184 = arith.select %181, %183, %179 : vector<8x128xi1>, vector<8x128xf32>
    %c35_i32 = arith.constant 35 : i32
    %185 = vector.broadcast %c35_i32 : i32 to vector<8x128xi32>
    %186 = arith.cmpi eq, %8, %185 : vector<8x128xi32>
    %c35 = arith.constant 35 : index
    %187 = memref.load %arg2[%c35] : memref<101xf32, #tpu.memory_space<smem>>
    %188 = vector.broadcast %187 : f32 to vector<8x128xf32>
    %189 = arith.select %186, %188, %184 : vector<8x128xi1>, vector<8x128xf32>
    %c36_i32 = arith.constant 36 : i32
    %190 = vector.broadcast %c36_i32 : i32 to vector<8x128xi32>
    %191 = arith.cmpi eq, %8, %190 : vector<8x128xi32>
    %c36 = arith.constant 36 : index
    %192 = memref.load %arg2[%c36] : memref<101xf32, #tpu.memory_space<smem>>
    %193 = vector.broadcast %192 : f32 to vector<8x128xf32>
    %194 = arith.select %191, %193, %189 : vector<8x128xi1>, vector<8x128xf32>
    %c37_i32 = arith.constant 37 : i32
    %195 = vector.broadcast %c37_i32 : i32 to vector<8x128xi32>
    %196 = arith.cmpi eq, %8, %195 : vector<8x128xi32>
    %c37 = arith.constant 37 : index
    %197 = memref.load %arg2[%c37] : memref<101xf32, #tpu.memory_space<smem>>
    %198 = vector.broadcast %197 : f32 to vector<8x128xf32>
    %199 = arith.select %196, %198, %194 : vector<8x128xi1>, vector<8x128xf32>
    %c38_i32 = arith.constant 38 : i32
    %200 = vector.broadcast %c38_i32 : i32 to vector<8x128xi32>
    %201 = arith.cmpi eq, %8, %200 : vector<8x128xi32>
    %c38 = arith.constant 38 : index
    %202 = memref.load %arg2[%c38] : memref<101xf32, #tpu.memory_space<smem>>
    %203 = vector.broadcast %202 : f32 to vector<8x128xf32>
    %204 = arith.select %201, %203, %199 : vector<8x128xi1>, vector<8x128xf32>
    %c39_i32 = arith.constant 39 : i32
    %205 = vector.broadcast %c39_i32 : i32 to vector<8x128xi32>
    %206 = arith.cmpi eq, %8, %205 : vector<8x128xi32>
    %c39 = arith.constant 39 : index
    %207 = memref.load %arg2[%c39] : memref<101xf32, #tpu.memory_space<smem>>
    %208 = vector.broadcast %207 : f32 to vector<8x128xf32>
    %209 = arith.select %206, %208, %204 : vector<8x128xi1>, vector<8x128xf32>
    %c40_i32 = arith.constant 40 : i32
    %210 = vector.broadcast %c40_i32 : i32 to vector<8x128xi32>
    %211 = arith.cmpi eq, %8, %210 : vector<8x128xi32>
    %c40 = arith.constant 40 : index
    %212 = memref.load %arg2[%c40] : memref<101xf32, #tpu.memory_space<smem>>
    %213 = vector.broadcast %212 : f32 to vector<8x128xf32>
    %214 = arith.select %211, %213, %209 : vector<8x128xi1>, vector<8x128xf32>
    %c41_i32 = arith.constant 41 : i32
    %215 = vector.broadcast %c41_i32 : i32 to vector<8x128xi32>
    %216 = arith.cmpi eq, %8, %215 : vector<8x128xi32>
    %c41 = arith.constant 41 : index
    %217 = memref.load %arg2[%c41] : memref<101xf32, #tpu.memory_space<smem>>
    %218 = vector.broadcast %217 : f32 to vector<8x128xf32>
    %219 = arith.select %216, %218, %214 : vector<8x128xi1>, vector<8x128xf32>
    %c42_i32 = arith.constant 42 : i32
    %220 = vector.broadcast %c42_i32 : i32 to vector<8x128xi32>
    %221 = arith.cmpi eq, %8, %220 : vector<8x128xi32>
    %c42 = arith.constant 42 : index
    %222 = memref.load %arg2[%c42] : memref<101xf32, #tpu.memory_space<smem>>
    %223 = vector.broadcast %222 : f32 to vector<8x128xf32>
    %224 = arith.select %221, %223, %219 : vector<8x128xi1>, vector<8x128xf32>
    %c43_i32 = arith.constant 43 : i32
    %225 = vector.broadcast %c43_i32 : i32 to vector<8x128xi32>
    %226 = arith.cmpi eq, %8, %225 : vector<8x128xi32>
    %c43 = arith.constant 43 : index
    %227 = memref.load %arg2[%c43] : memref<101xf32, #tpu.memory_space<smem>>
    %228 = vector.broadcast %227 : f32 to vector<8x128xf32>
    %229 = arith.select %226, %228, %224 : vector<8x128xi1>, vector<8x128xf32>
    %c44_i32 = arith.constant 44 : i32
    %230 = vector.broadcast %c44_i32 : i32 to vector<8x128xi32>
    %231 = arith.cmpi eq, %8, %230 : vector<8x128xi32>
    %c44 = arith.constant 44 : index
    %232 = memref.load %arg2[%c44] : memref<101xf32, #tpu.memory_space<smem>>
    %233 = vector.broadcast %232 : f32 to vector<8x128xf32>
    %234 = arith.select %231, %233, %229 : vector<8x128xi1>, vector<8x128xf32>
    %c45_i32 = arith.constant 45 : i32
    %235 = vector.broadcast %c45_i32 : i32 to vector<8x128xi32>
    %236 = arith.cmpi eq, %8, %235 : vector<8x128xi32>
    %c45 = arith.constant 45 : index
    %237 = memref.load %arg2[%c45] : memref<101xf32, #tpu.memory_space<smem>>
    %238 = vector.broadcast %237 : f32 to vector<8x128xf32>
    %239 = arith.select %236, %238, %234 : vector<8x128xi1>, vector<8x128xf32>
    %c46_i32 = arith.constant 46 : i32
    %240 = vector.broadcast %c46_i32 : i32 to vector<8x128xi32>
    %241 = arith.cmpi eq, %8, %240 : vector<8x128xi32>
    %c46 = arith.constant 46 : index
    %242 = memref.load %arg2[%c46] : memref<101xf32, #tpu.memory_space<smem>>
    %243 = vector.broadcast %242 : f32 to vector<8x128xf32>
    %244 = arith.select %241, %243, %239 : vector<8x128xi1>, vector<8x128xf32>
    %c47_i32 = arith.constant 47 : i32
    %245 = vector.broadcast %c47_i32 : i32 to vector<8x128xi32>
    %246 = arith.cmpi eq, %8, %245 : vector<8x128xi32>
    %c47 = arith.constant 47 : index
    %247 = memref.load %arg2[%c47] : memref<101xf32, #tpu.memory_space<smem>>
    %248 = vector.broadcast %247 : f32 to vector<8x128xf32>
    %249 = arith.select %246, %248, %244 : vector<8x128xi1>, vector<8x128xf32>
    %c48_i32 = arith.constant 48 : i32
    %250 = vector.broadcast %c48_i32 : i32 to vector<8x128xi32>
    %251 = arith.cmpi eq, %8, %250 : vector<8x128xi32>
    %c48 = arith.constant 48 : index
    %252 = memref.load %arg2[%c48] : memref<101xf32, #tpu.memory_space<smem>>
    %253 = vector.broadcast %252 : f32 to vector<8x128xf32>
    %254 = arith.select %251, %253, %249 : vector<8x128xi1>, vector<8x128xf32>
    %c49_i32 = arith.constant 49 : i32
    %255 = vector.broadcast %c49_i32 : i32 to vector<8x128xi32>
    %256 = arith.cmpi eq, %8, %255 : vector<8x128xi32>
    %c49 = arith.constant 49 : index
    %257 = memref.load %arg2[%c49] : memref<101xf32, #tpu.memory_space<smem>>
    %258 = vector.broadcast %257 : f32 to vector<8x128xf32>
    %259 = arith.select %256, %258, %254 : vector<8x128xi1>, vector<8x128xf32>
    %c50_i32 = arith.constant 50 : i32
    %260 = vector.broadcast %c50_i32 : i32 to vector<8x128xi32>
    %261 = arith.cmpi eq, %8, %260 : vector<8x128xi32>
    %c50 = arith.constant 50 : index
    %262 = memref.load %arg2[%c50] : memref<101xf32, #tpu.memory_space<smem>>
    %263 = vector.broadcast %262 : f32 to vector<8x128xf32>
    %264 = arith.select %261, %263, %259 : vector<8x128xi1>, vector<8x128xf32>
    %c51_i32 = arith.constant 51 : i32
    %265 = vector.broadcast %c51_i32 : i32 to vector<8x128xi32>
    %266 = arith.cmpi eq, %8, %265 : vector<8x128xi32>
    %c51 = arith.constant 51 : index
    %267 = memref.load %arg2[%c51] : memref<101xf32, #tpu.memory_space<smem>>
    %268 = vector.broadcast %267 : f32 to vector<8x128xf32>
    %269 = arith.select %266, %268, %264 : vector<8x128xi1>, vector<8x128xf32>
    %c52_i32 = arith.constant 52 : i32
    %270 = vector.broadcast %c52_i32 : i32 to vector<8x128xi32>
    %271 = arith.cmpi eq, %8, %270 : vector<8x128xi32>
    %c52 = arith.constant 52 : index
    %272 = memref.load %arg2[%c52] : memref<101xf32, #tpu.memory_space<smem>>
    %273 = vector.broadcast %272 : f32 to vector<8x128xf32>
    %274 = arith.select %271, %273, %269 : vector<8x128xi1>, vector<8x128xf32>
    %c53_i32 = arith.constant 53 : i32
    %275 = vector.broadcast %c53_i32 : i32 to vector<8x128xi32>
    %276 = arith.cmpi eq, %8, %275 : vector<8x128xi32>
    %c53 = arith.constant 53 : index
    %277 = memref.load %arg2[%c53] : memref<101xf32, #tpu.memory_space<smem>>
    %278 = vector.broadcast %277 : f32 to vector<8x128xf32>
    %279 = arith.select %276, %278, %274 : vector<8x128xi1>, vector<8x128xf32>
    %c54_i32 = arith.constant 54 : i32
    %280 = vector.broadcast %c54_i32 : i32 to vector<8x128xi32>
    %281 = arith.cmpi eq, %8, %280 : vector<8x128xi32>
    %c54 = arith.constant 54 : index
    %282 = memref.load %arg2[%c54] : memref<101xf32, #tpu.memory_space<smem>>
    %283 = vector.broadcast %282 : f32 to vector<8x128xf32>
    %284 = arith.select %281, %283, %279 : vector<8x128xi1>, vector<8x128xf32>
    %c55_i32 = arith.constant 55 : i32
    %285 = vector.broadcast %c55_i32 : i32 to vector<8x128xi32>
    %286 = arith.cmpi eq, %8, %285 : vector<8x128xi32>
    %c55 = arith.constant 55 : index
    %287 = memref.load %arg2[%c55] : memref<101xf32, #tpu.memory_space<smem>>
    %288 = vector.broadcast %287 : f32 to vector<8x128xf32>
    %289 = arith.select %286, %288, %284 : vector<8x128xi1>, vector<8x128xf32>
    %c56_i32 = arith.constant 56 : i32
    %290 = vector.broadcast %c56_i32 : i32 to vector<8x128xi32>
    %291 = arith.cmpi eq, %8, %290 : vector<8x128xi32>
    %c56 = arith.constant 56 : index
    %292 = memref.load %arg2[%c56] : memref<101xf32, #tpu.memory_space<smem>>
    %293 = vector.broadcast %292 : f32 to vector<8x128xf32>
    %294 = arith.select %291, %293, %289 : vector<8x128xi1>, vector<8x128xf32>
    %c57_i32 = arith.constant 57 : i32
    %295 = vector.broadcast %c57_i32 : i32 to vector<8x128xi32>
    %296 = arith.cmpi eq, %8, %295 : vector<8x128xi32>
    %c57 = arith.constant 57 : index
    %297 = memref.load %arg2[%c57] : memref<101xf32, #tpu.memory_space<smem>>
    %298 = vector.broadcast %297 : f32 to vector<8x128xf32>
    %299 = arith.select %296, %298, %294 : vector<8x128xi1>, vector<8x128xf32>
    %c58_i32 = arith.constant 58 : i32
    %300 = vector.broadcast %c58_i32 : i32 to vector<8x128xi32>
    %301 = arith.cmpi eq, %8, %300 : vector<8x128xi32>
    %c58 = arith.constant 58 : index
    %302 = memref.load %arg2[%c58] : memref<101xf32, #tpu.memory_space<smem>>
    %303 = vector.broadcast %302 : f32 to vector<8x128xf32>
    %304 = arith.select %301, %303, %299 : vector<8x128xi1>, vector<8x128xf32>
    %c59_i32 = arith.constant 59 : i32
    %305 = vector.broadcast %c59_i32 : i32 to vector<8x128xi32>
    %306 = arith.cmpi eq, %8, %305 : vector<8x128xi32>
    %c59 = arith.constant 59 : index
    %307 = memref.load %arg2[%c59] : memref<101xf32, #tpu.memory_space<smem>>
    %308 = vector.broadcast %307 : f32 to vector<8x128xf32>
    %309 = arith.select %306, %308, %304 : vector<8x128xi1>, vector<8x128xf32>
    %c60_i32 = arith.constant 60 : i32
    %310 = vector.broadcast %c60_i32 : i32 to vector<8x128xi32>
    %311 = arith.cmpi eq, %8, %310 : vector<8x128xi32>
    %c60 = arith.constant 60 : index
    %312 = memref.load %arg2[%c60] : memref<101xf32, #tpu.memory_space<smem>>
    %313 = vector.broadcast %312 : f32 to vector<8x128xf32>
    %314 = arith.select %311, %313, %309 : vector<8x128xi1>, vector<8x128xf32>
    %c61_i32 = arith.constant 61 : i32
    %315 = vector.broadcast %c61_i32 : i32 to vector<8x128xi32>
    %316 = arith.cmpi eq, %8, %315 : vector<8x128xi32>
    %c61 = arith.constant 61 : index
    %317 = memref.load %arg2[%c61] : memref<101xf32, #tpu.memory_space<smem>>
    %318 = vector.broadcast %317 : f32 to vector<8x128xf32>
    %319 = arith.select %316, %318, %314 : vector<8x128xi1>, vector<8x128xf32>
    %c62_i32 = arith.constant 62 : i32
    %320 = vector.broadcast %c62_i32 : i32 to vector<8x128xi32>
    %321 = arith.cmpi eq, %8, %320 : vector<8x128xi32>
    %c62 = arith.constant 62 : index
    %322 = memref.load %arg2[%c62] : memref<101xf32, #tpu.memory_space<smem>>
    %323 = vector.broadcast %322 : f32 to vector<8x128xf32>
    %324 = arith.select %321, %323, %319 : vector<8x128xi1>, vector<8x128xf32>
    %c63_i32 = arith.constant 63 : i32
    %325 = vector.broadcast %c63_i32 : i32 to vector<8x128xi32>
    %326 = arith.cmpi eq, %8, %325 : vector<8x128xi32>
    %c63 = arith.constant 63 : index
    %327 = memref.load %arg2[%c63] : memref<101xf32, #tpu.memory_space<smem>>
    %328 = vector.broadcast %327 : f32 to vector<8x128xf32>
    %329 = arith.select %326, %328, %324 : vector<8x128xi1>, vector<8x128xf32>
    %c64_i32 = arith.constant 64 : i32
    %330 = vector.broadcast %c64_i32 : i32 to vector<8x128xi32>
    %331 = arith.cmpi eq, %8, %330 : vector<8x128xi32>
    %c64 = arith.constant 64 : index
    %332 = memref.load %arg2[%c64] : memref<101xf32, #tpu.memory_space<smem>>
    %333 = vector.broadcast %332 : f32 to vector<8x128xf32>
    %334 = arith.select %331, %333, %329 : vector<8x128xi1>, vector<8x128xf32>
    %c65_i32 = arith.constant 65 : i32
    %335 = vector.broadcast %c65_i32 : i32 to vector<8x128xi32>
    %336 = arith.cmpi eq, %8, %335 : vector<8x128xi32>
    %c65 = arith.constant 65 : index
    %337 = memref.load %arg2[%c65] : memref<101xf32, #tpu.memory_space<smem>>
    %338 = vector.broadcast %337 : f32 to vector<8x128xf32>
    %339 = arith.select %336, %338, %334 : vector<8x128xi1>, vector<8x128xf32>
    %c66_i32 = arith.constant 66 : i32
    %340 = vector.broadcast %c66_i32 : i32 to vector<8x128xi32>
    %341 = arith.cmpi eq, %8, %340 : vector<8x128xi32>
    %c66 = arith.constant 66 : index
    %342 = memref.load %arg2[%c66] : memref<101xf32, #tpu.memory_space<smem>>
    %343 = vector.broadcast %342 : f32 to vector<8x128xf32>
    %344 = arith.select %341, %343, %339 : vector<8x128xi1>, vector<8x128xf32>
    %c67_i32 = arith.constant 67 : i32
    %345 = vector.broadcast %c67_i32 : i32 to vector<8x128xi32>
    %346 = arith.cmpi eq, %8, %345 : vector<8x128xi32>
    %c67 = arith.constant 67 : index
    %347 = memref.load %arg2[%c67] : memref<101xf32, #tpu.memory_space<smem>>
    %348 = vector.broadcast %347 : f32 to vector<8x128xf32>
    %349 = arith.select %346, %348, %344 : vector<8x128xi1>, vector<8x128xf32>
    %c68_i32 = arith.constant 68 : i32
    %350 = vector.broadcast %c68_i32 : i32 to vector<8x128xi32>
    %351 = arith.cmpi eq, %8, %350 : vector<8x128xi32>
    %c68 = arith.constant 68 : index
    %352 = memref.load %arg2[%c68] : memref<101xf32, #tpu.memory_space<smem>>
    %353 = vector.broadcast %352 : f32 to vector<8x128xf32>
    %354 = arith.select %351, %353, %349 : vector<8x128xi1>, vector<8x128xf32>
    %c69_i32 = arith.constant 69 : i32
    %355 = vector.broadcast %c69_i32 : i32 to vector<8x128xi32>
    %356 = arith.cmpi eq, %8, %355 : vector<8x128xi32>
    %c69 = arith.constant 69 : index
    %357 = memref.load %arg2[%c69] : memref<101xf32, #tpu.memory_space<smem>>
    %358 = vector.broadcast %357 : f32 to vector<8x128xf32>
    %359 = arith.select %356, %358, %354 : vector<8x128xi1>, vector<8x128xf32>
    %c70_i32 = arith.constant 70 : i32
    %360 = vector.broadcast %c70_i32 : i32 to vector<8x128xi32>
    %361 = arith.cmpi eq, %8, %360 : vector<8x128xi32>
    %c70 = arith.constant 70 : index
    %362 = memref.load %arg2[%c70] : memref<101xf32, #tpu.memory_space<smem>>
    %363 = vector.broadcast %362 : f32 to vector<8x128xf32>
    %364 = arith.select %361, %363, %359 : vector<8x128xi1>, vector<8x128xf32>
    %c71_i32 = arith.constant 71 : i32
    %365 = vector.broadcast %c71_i32 : i32 to vector<8x128xi32>
    %366 = arith.cmpi eq, %8, %365 : vector<8x128xi32>
    %c71 = arith.constant 71 : index
    %367 = memref.load %arg2[%c71] : memref<101xf32, #tpu.memory_space<smem>>
    %368 = vector.broadcast %367 : f32 to vector<8x128xf32>
    %369 = arith.select %366, %368, %364 : vector<8x128xi1>, vector<8x128xf32>
    %c72_i32 = arith.constant 72 : i32
    %370 = vector.broadcast %c72_i32 : i32 to vector<8x128xi32>
    %371 = arith.cmpi eq, %8, %370 : vector<8x128xi32>
    %c72 = arith.constant 72 : index
    %372 = memref.load %arg2[%c72] : memref<101xf32, #tpu.memory_space<smem>>
    %373 = vector.broadcast %372 : f32 to vector<8x128xf32>
    %374 = arith.select %371, %373, %369 : vector<8x128xi1>, vector<8x128xf32>
    %c73_i32 = arith.constant 73 : i32
    %375 = vector.broadcast %c73_i32 : i32 to vector<8x128xi32>
    %376 = arith.cmpi eq, %8, %375 : vector<8x128xi32>
    %c73 = arith.constant 73 : index
    %377 = memref.load %arg2[%c73] : memref<101xf32, #tpu.memory_space<smem>>
    %378 = vector.broadcast %377 : f32 to vector<8x128xf32>
    %379 = arith.select %376, %378, %374 : vector<8x128xi1>, vector<8x128xf32>
    %c74_i32 = arith.constant 74 : i32
    %380 = vector.broadcast %c74_i32 : i32 to vector<8x128xi32>
    %381 = arith.cmpi eq, %8, %380 : vector<8x128xi32>
    %c74 = arith.constant 74 : index
    %382 = memref.load %arg2[%c74] : memref<101xf32, #tpu.memory_space<smem>>
    %383 = vector.broadcast %382 : f32 to vector<8x128xf32>
    %384 = arith.select %381, %383, %379 : vector<8x128xi1>, vector<8x128xf32>
    %c75_i32 = arith.constant 75 : i32
    %385 = vector.broadcast %c75_i32 : i32 to vector<8x128xi32>
    %386 = arith.cmpi eq, %8, %385 : vector<8x128xi32>
    %c75 = arith.constant 75 : index
    %387 = memref.load %arg2[%c75] : memref<101xf32, #tpu.memory_space<smem>>
    %388 = vector.broadcast %387 : f32 to vector<8x128xf32>
    %389 = arith.select %386, %388, %384 : vector<8x128xi1>, vector<8x128xf32>
    %c76_i32 = arith.constant 76 : i32
    %390 = vector.broadcast %c76_i32 : i32 to vector<8x128xi32>
    %391 = arith.cmpi eq, %8, %390 : vector<8x128xi32>
    %c76 = arith.constant 76 : index
    %392 = memref.load %arg2[%c76] : memref<101xf32, #tpu.memory_space<smem>>
    %393 = vector.broadcast %392 : f32 to vector<8x128xf32>
    %394 = arith.select %391, %393, %389 : vector<8x128xi1>, vector<8x128xf32>
    %c77_i32 = arith.constant 77 : i32
    %395 = vector.broadcast %c77_i32 : i32 to vector<8x128xi32>
    %396 = arith.cmpi eq, %8, %395 : vector<8x128xi32>
    %c77 = arith.constant 77 : index
    %397 = memref.load %arg2[%c77] : memref<101xf32, #tpu.memory_space<smem>>
    %398 = vector.broadcast %397 : f32 to vector<8x128xf32>
    %399 = arith.select %396, %398, %394 : vector<8x128xi1>, vector<8x128xf32>
    %c78_i32 = arith.constant 78 : i32
    %400 = vector.broadcast %c78_i32 : i32 to vector<8x128xi32>
    %401 = arith.cmpi eq, %8, %400 : vector<8x128xi32>
    %c78 = arith.constant 78 : index
    %402 = memref.load %arg2[%c78] : memref<101xf32, #tpu.memory_space<smem>>
    %403 = vector.broadcast %402 : f32 to vector<8x128xf32>
    %404 = arith.select %401, %403, %399 : vector<8x128xi1>, vector<8x128xf32>
    %c79_i32 = arith.constant 79 : i32
    %405 = vector.broadcast %c79_i32 : i32 to vector<8x128xi32>
    %406 = arith.cmpi eq, %8, %405 : vector<8x128xi32>
    %c79 = arith.constant 79 : index
    %407 = memref.load %arg2[%c79] : memref<101xf32, #tpu.memory_space<smem>>
    %408 = vector.broadcast %407 : f32 to vector<8x128xf32>
    %409 = arith.select %406, %408, %404 : vector<8x128xi1>, vector<8x128xf32>
    %c80_i32 = arith.constant 80 : i32
    %410 = vector.broadcast %c80_i32 : i32 to vector<8x128xi32>
    %411 = arith.cmpi eq, %8, %410 : vector<8x128xi32>
    %c80 = arith.constant 80 : index
    %412 = memref.load %arg2[%c80] : memref<101xf32, #tpu.memory_space<smem>>
    %413 = vector.broadcast %412 : f32 to vector<8x128xf32>
    %414 = arith.select %411, %413, %409 : vector<8x128xi1>, vector<8x128xf32>
    %c81_i32 = arith.constant 81 : i32
    %415 = vector.broadcast %c81_i32 : i32 to vector<8x128xi32>
    %416 = arith.cmpi eq, %8, %415 : vector<8x128xi32>
    %c81 = arith.constant 81 : index
    %417 = memref.load %arg2[%c81] : memref<101xf32, #tpu.memory_space<smem>>
    %418 = vector.broadcast %417 : f32 to vector<8x128xf32>
    %419 = arith.select %416, %418, %414 : vector<8x128xi1>, vector<8x128xf32>
    %c82_i32 = arith.constant 82 : i32
    %420 = vector.broadcast %c82_i32 : i32 to vector<8x128xi32>
    %421 = arith.cmpi eq, %8, %420 : vector<8x128xi32>
    %c82 = arith.constant 82 : index
    %422 = memref.load %arg2[%c82] : memref<101xf32, #tpu.memory_space<smem>>
    %423 = vector.broadcast %422 : f32 to vector<8x128xf32>
    %424 = arith.select %421, %423, %419 : vector<8x128xi1>, vector<8x128xf32>
    %c83_i32 = arith.constant 83 : i32
    %425 = vector.broadcast %c83_i32 : i32 to vector<8x128xi32>
    %426 = arith.cmpi eq, %8, %425 : vector<8x128xi32>
    %c83 = arith.constant 83 : index
    %427 = memref.load %arg2[%c83] : memref<101xf32, #tpu.memory_space<smem>>
    %428 = vector.broadcast %427 : f32 to vector<8x128xf32>
    %429 = arith.select %426, %428, %424 : vector<8x128xi1>, vector<8x128xf32>
    %c84_i32 = arith.constant 84 : i32
    %430 = vector.broadcast %c84_i32 : i32 to vector<8x128xi32>
    %431 = arith.cmpi eq, %8, %430 : vector<8x128xi32>
    %c84 = arith.constant 84 : index
    %432 = memref.load %arg2[%c84] : memref<101xf32, #tpu.memory_space<smem>>
    %433 = vector.broadcast %432 : f32 to vector<8x128xf32>
    %434 = arith.select %431, %433, %429 : vector<8x128xi1>, vector<8x128xf32>
    %c85_i32 = arith.constant 85 : i32
    %435 = vector.broadcast %c85_i32 : i32 to vector<8x128xi32>
    %436 = arith.cmpi eq, %8, %435 : vector<8x128xi32>
    %c85 = arith.constant 85 : index
    %437 = memref.load %arg2[%c85] : memref<101xf32, #tpu.memory_space<smem>>
    %438 = vector.broadcast %437 : f32 to vector<8x128xf32>
    %439 = arith.select %436, %438, %434 : vector<8x128xi1>, vector<8x128xf32>
    %c86_i32 = arith.constant 86 : i32
    %440 = vector.broadcast %c86_i32 : i32 to vector<8x128xi32>
    %441 = arith.cmpi eq, %8, %440 : vector<8x128xi32>
    %c86 = arith.constant 86 : index
    %442 = memref.load %arg2[%c86] : memref<101xf32, #tpu.memory_space<smem>>
    %443 = vector.broadcast %442 : f32 to vector<8x128xf32>
    %444 = arith.select %441, %443, %439 : vector<8x128xi1>, vector<8x128xf32>
    %c87_i32 = arith.constant 87 : i32
    %445 = vector.broadcast %c87_i32 : i32 to vector<8x128xi32>
    %446 = arith.cmpi eq, %8, %445 : vector<8x128xi32>
    %c87 = arith.constant 87 : index
    %447 = memref.load %arg2[%c87] : memref<101xf32, #tpu.memory_space<smem>>
    %448 = vector.broadcast %447 : f32 to vector<8x128xf32>
    %449 = arith.select %446, %448, %444 : vector<8x128xi1>, vector<8x128xf32>
    %c88_i32 = arith.constant 88 : i32
    %450 = vector.broadcast %c88_i32 : i32 to vector<8x128xi32>
    %451 = arith.cmpi eq, %8, %450 : vector<8x128xi32>
    %c88 = arith.constant 88 : index
    %452 = memref.load %arg2[%c88] : memref<101xf32, #tpu.memory_space<smem>>
    %453 = vector.broadcast %452 : f32 to vector<8x128xf32>
    %454 = arith.select %451, %453, %449 : vector<8x128xi1>, vector<8x128xf32>
    %c89_i32 = arith.constant 89 : i32
    %455 = vector.broadcast %c89_i32 : i32 to vector<8x128xi32>
    %456 = arith.cmpi eq, %8, %455 : vector<8x128xi32>
    %c89 = arith.constant 89 : index
    %457 = memref.load %arg2[%c89] : memref<101xf32, #tpu.memory_space<smem>>
    %458 = vector.broadcast %457 : f32 to vector<8x128xf32>
    %459 = arith.select %456, %458, %454 : vector<8x128xi1>, vector<8x128xf32>
    %c90_i32 = arith.constant 90 : i32
    %460 = vector.broadcast %c90_i32 : i32 to vector<8x128xi32>
    %461 = arith.cmpi eq, %8, %460 : vector<8x128xi32>
    %c90 = arith.constant 90 : index
    %462 = memref.load %arg2[%c90] : memref<101xf32, #tpu.memory_space<smem>>
    %463 = vector.broadcast %462 : f32 to vector<8x128xf32>
    %464 = arith.select %461, %463, %459 : vector<8x128xi1>, vector<8x128xf32>
    %c91_i32 = arith.constant 91 : i32
    %465 = vector.broadcast %c91_i32 : i32 to vector<8x128xi32>
    %466 = arith.cmpi eq, %8, %465 : vector<8x128xi32>
    %c91 = arith.constant 91 : index
    %467 = memref.load %arg2[%c91] : memref<101xf32, #tpu.memory_space<smem>>
    %468 = vector.broadcast %467 : f32 to vector<8x128xf32>
    %469 = arith.select %466, %468, %464 : vector<8x128xi1>, vector<8x128xf32>
    %c92_i32 = arith.constant 92 : i32
    %470 = vector.broadcast %c92_i32 : i32 to vector<8x128xi32>
    %471 = arith.cmpi eq, %8, %470 : vector<8x128xi32>
    %c92 = arith.constant 92 : index
    %472 = memref.load %arg2[%c92] : memref<101xf32, #tpu.memory_space<smem>>
    %473 = vector.broadcast %472 : f32 to vector<8x128xf32>
    %474 = arith.select %471, %473, %469 : vector<8x128xi1>, vector<8x128xf32>
    %c93_i32 = arith.constant 93 : i32
    %475 = vector.broadcast %c93_i32 : i32 to vector<8x128xi32>
    %476 = arith.cmpi eq, %8, %475 : vector<8x128xi32>
    %c93 = arith.constant 93 : index
    %477 = memref.load %arg2[%c93] : memref<101xf32, #tpu.memory_space<smem>>
    %478 = vector.broadcast %477 : f32 to vector<8x128xf32>
    %479 = arith.select %476, %478, %474 : vector<8x128xi1>, vector<8x128xf32>
    %c94_i32 = arith.constant 94 : i32
    %480 = vector.broadcast %c94_i32 : i32 to vector<8x128xi32>
    %481 = arith.cmpi eq, %8, %480 : vector<8x128xi32>
    %c94 = arith.constant 94 : index
    %482 = memref.load %arg2[%c94] : memref<101xf32, #tpu.memory_space<smem>>
    %483 = vector.broadcast %482 : f32 to vector<8x128xf32>
    %484 = arith.select %481, %483, %479 : vector<8x128xi1>, vector<8x128xf32>
    %c95_i32 = arith.constant 95 : i32
    %485 = vector.broadcast %c95_i32 : i32 to vector<8x128xi32>
    %486 = arith.cmpi eq, %8, %485 : vector<8x128xi32>
    %c95 = arith.constant 95 : index
    %487 = memref.load %arg2[%c95] : memref<101xf32, #tpu.memory_space<smem>>
    %488 = vector.broadcast %487 : f32 to vector<8x128xf32>
    %489 = arith.select %486, %488, %484 : vector<8x128xi1>, vector<8x128xf32>
    %c96_i32 = arith.constant 96 : i32
    %490 = vector.broadcast %c96_i32 : i32 to vector<8x128xi32>
    %491 = arith.cmpi eq, %8, %490 : vector<8x128xi32>
    %c96 = arith.constant 96 : index
    %492 = memref.load %arg2[%c96] : memref<101xf32, #tpu.memory_space<smem>>
    %493 = vector.broadcast %492 : f32 to vector<8x128xf32>
    %494 = arith.select %491, %493, %489 : vector<8x128xi1>, vector<8x128xf32>
    %c97_i32 = arith.constant 97 : i32
    %495 = vector.broadcast %c97_i32 : i32 to vector<8x128xi32>
    %496 = arith.cmpi eq, %8, %495 : vector<8x128xi32>
    %c97 = arith.constant 97 : index
    %497 = memref.load %arg2[%c97] : memref<101xf32, #tpu.memory_space<smem>>
    %498 = vector.broadcast %497 : f32 to vector<8x128xf32>
    %499 = arith.select %496, %498, %494 : vector<8x128xi1>, vector<8x128xf32>
    %c98_i32 = arith.constant 98 : i32
    %500 = vector.broadcast %c98_i32 : i32 to vector<8x128xi32>
    %501 = arith.cmpi eq, %8, %500 : vector<8x128xi32>
    %c98 = arith.constant 98 : index
    %502 = memref.load %arg2[%c98] : memref<101xf32, #tpu.memory_space<smem>>
    %503 = vector.broadcast %502 : f32 to vector<8x128xf32>
    %504 = arith.select %501, %503, %499 : vector<8x128xi1>, vector<8x128xf32>
    %c99_i32 = arith.constant 99 : i32
    %505 = vector.broadcast %c99_i32 : i32 to vector<8x128xi32>
    %506 = arith.cmpi eq, %8, %505 : vector<8x128xi32>
    %c99 = arith.constant 99 : index
    %507 = memref.load %arg2[%c99] : memref<101xf32, #tpu.memory_space<smem>>
    %508 = vector.broadcast %507 : f32 to vector<8x128xf32>
    %509 = arith.select %506, %508, %504 : vector<8x128xi1>, vector<8x128xf32>
    %c100_i32_4 = arith.constant 100 : i32
    %510 = vector.broadcast %c100_i32_4 : i32 to vector<8x128xi32>
    %511 = arith.cmpi eq, %8, %510 : vector<8x128xi32>
    %c100 = arith.constant 100 : index
    %512 = memref.load %arg2[%c100] : memref<101xf32, #tpu.memory_space<smem>>
    %513 = vector.broadcast %512 : f32 to vector<8x128xf32>
    %514 = arith.select %511, %513, %509 : vector<8x128xi1>, vector<8x128xf32>
    %c0_5 = arith.constant 0 : index
    %c0_6 = arith.constant 0 : index
    %515 = vector.load %arg3[%c0_5, %c0_6] : memref<8x128xf32, #tpu.memory_space<vmem>>, vector<8x128xf32>
    tpu.vector_store %arg3[%c0_5, %c0_6], %514 {strides = array<i32>} : memref<8x128xf32, #tpu.memory_space<vmem>>, vector<8x128xf32>,
    return
  }
  func.func @transform_0(%arg0: i32) -> (i32, i32) {
    %c0_i32 = arith.constant 0 : i32
    %c0_i32_0 = arith.constant 0 : i32
    return %arg0, %c0_i32 : i32, i32
  }
  func.func @transform_1(%arg0: i32) -> i32 {
    %c0_i32 = arith.constant 0 : i32
    %c0_i32_0 = arith.constant 0 : i32
    return %c0_i32 : i32
  }
  func.func @transform_2(%arg0: i32) -> (i32, i32) {
    %c0_i32 = arith.constant 0 : i32
    %c0_i32_0 = arith.constant 0 : i32
    return %arg0, %c0_i32 : i32, i32
  }
}

</mosaic_0001>

<llo_original>
// kernel: _forward_impl.1
$region0: #{_forward_impl.1}
  #allocation0 [shape = 'u32[]', space=smem, size = 0x4, offset = 0x4, fixed_abs, tag = 'smem constant byte address 0x4 - core index']
  #allocation1 [shape = 'u32[144,128]{1,0:T(1,128)}', space=vmem, size = 0x12000, scoped, tag = 'internal scratch']
  %s0 = inlined_call_operand.vmem [shape: f32[8,128], index: 0, kind: input, shape index: {}]
  %s1 = inlined_call_operand.vmem [shape: f32[101], index: 1, kind: input, shape index: {}]
  %s2 = inlined_call_operand.vmem [shape: f32[8,128], index: 2, kind: output, shape index: {}]
  %s3 = sld [smem:[#allocation0]]
  $region22: #{_forward_impl.1} parent=0
    _
  %s5 = ssub.s32 1, %s3
  %s6 = scalar_select 0, %s5, %s3
  $region1: #{_forward_impl.1} parent=0
    #allocation2 [shape = 'u8[512]{0}', space=smem, size = 0x200, scoped, tag = 'input window, operand 1, single buffered']
    #allocation3 [shape = 's32[1]{0}', space=sflag, size = 0x4, scoped, tag = 'scoped memory for _forward_impl.1']
    %7 = vsyncpa [#allocation3], 0
    // Predicated region
    $region2: #{_forward_impl.1} parent=1 // pred_check
      _
    $region3: #{_forward_impl.1} parent=1 // pred_check_branch
      %9 = sbr.rel (0) target = $region5
    $region4: #{_forward_impl.1} parent=1 // pred_region
      _
    $region5: #{_forward_impl.1} parent=1 // pred_fallthru
      _
    // Predicated region
    $region6: #{_forward_impl.1} parent=1 // pred_check
      _
    $region7: #{_forward_impl.1} parent=1 // pred_check_branch
      %11 = sbr.rel (0) target = $region9
    $region8: #{_forward_impl.1} parent=1 // pred_region
      %s13 = ssub.s32 16, 16
      %14 = vsyncadd [#allocation3], %s13
      %s16 = sshll.u32 %s1, 4
      %s17 = int_to_ptr.vmem [resolvable:$true] %s16
      %19 = dma.vmem_to_smem %s17, 16, [#allocation2], [#allocation3]
    $region9: #{_forward_impl.1} parent=1 // pred_fallthru
      _
    // Predicated region
    $region10: #{_forward_impl.1} parent=1 // pred_check
      _
    $region11: #{_forward_impl.1} parent=1 // pred_check_branch
      %21 = sbr.rel (0) target = $region13
    $region12: #{_forward_impl.1} parent=1 // pred_region
      %22 = dma.done [#allocation3], 16
    $region13: #{_forward_impl.1} parent=1 // pred_fallthru
      _
    %23 = sfence
    %v24 = vld [vmem:[%s0] sm:$0xff]
    %v25 = vmul.f32 %v24, 100.0
    %v26 = vcvt.f32.s32.ties.to.even %v25
    %vm27 = vcmp.gt.s32.totalorder %v26, 0
    %v28 = vsel %vm27, %v26, 0
    %vm29 = vcmp.lt.s32.totalorder %v28, 100
    %v30 = vsel %vm29, %v28, 100
    %vm31 = vcmp.eq.s32.totalorder %v30, 0
    %s32 = sld [smem:[#allocation2]]
    %v33 = vstv %s32
    %v34 = vsel %vm31, %v33, 0.0
    %vm35 = vcmp.eq.s32.totalorder %v30, 1
    %s36 = sld [smem:[#allocation2 + $0x1]]
    %v37 = vstv %s36
    %v38 = vsel %vm35, %v37, %v34
    %vm39 = vcmp.eq.s32.totalorder %v30, 2
    %s40 = sld [smem:[#allocation2 + $0x2]]
    %v41 = vstv %s40
    %v42 = vsel %vm39, %v41, %v38
    %vm43 = vcmp.eq.s32.totalorder %v30, 3
    %s44 = sld [smem:[#allocation2 + $0x3]]
    %v45 = vstv %s44
    %v46 = vsel %vm43, %v45, %v42
    %vm47 = vcmp.eq.s32.totalorder %v30, 4
    %s48 = sld [smem:[#allocation2 + $0x4]]
    %v49 = vstv %s48
    %v50 = vsel %vm47, %v49, %v46
    %vm51 = vcmp.eq.s32.totalorder %v30, 5
    %s52 = sld [smem:[#allocation2 + $0x5]]
    %v53 = vstv %s52
    %v54 = vsel %vm51, %v53, %v50
    %vm55 = vcmp.eq.s32.totalorder %v30, 6
    %s56 = sld [smem:[#allocation2 + $0x6]]
    %v57 = vstv %s56
    %v58 = vsel %vm55, %v57, %v54
    %vm59 = vcmp.eq.s32.totalorder %v30, 7
    %s60 = sld [smem:[#allocation2 + $0x7]]
    %v61 = vstv %s60
    %v62 = vsel %vm59, %v61, %v58
    %vm63 = vcmp.eq.s32.totalorder %v30, 8
    %s64 = sld [smem:[#allocation2 + $0x8]]
    %v65 = vstv %s64
    %v66 = vsel %vm63, %v65, %v62
    %vm67 = vcmp.eq.s32.totalorder %v30, 9
    %s68 = sld [smem:[#allocation2 + $0x9]]
    %v69 = vstv %s68
    %v70 = vsel %vm67, %v69, %v66
    %vm71 = vcmp.eq.s32.totalorder %v30, 10
    %s72 = sld [smem:[#allocation2 + $0xa]]
    %v73 = vstv %s72
    %v74 = vsel %vm71, %v73, %v70
    %vm75 = vcmp.eq.s32.totalorder %v30, 11
    %s76 = sld [smem:[#allocation2 + $0xb]]
    %v77 = vstv %s76
    %v78 = vsel %vm75, %v77, %v74
    %vm79 = vcmp.eq.s32.totalorder %v30, 12
    %s80 = sld [smem:[#allocation2 + $0xc]]
    %v81 = vstv %s80
    %v82 = vsel %vm79, %v81, %v78
    %vm83 = vcmp.eq.s32.totalorder %v30, 13
    %s84 = sld [smem:[#allocation2 + $0xd]]
    %v85 = vstv %s84
    %v86 = vsel %vm83, %v85, %v82
    %vm87 = vcmp.eq.s32.totalorder %v30, 14
    %s88 = sld [smem:[#allocation2 + $0xe]]
    %v89 = vstv %s88
    %v90 = vsel %vm87, %v89, %v86
    %vm91 = vcmp.eq.s32.totalorder %v30, 15
    %s92 = sld [smem:[#allocation2 + $0xf]]
    %v93 = vstv %s92
    %v94 = vsel %vm91, %v93, %v90
    %vm95 = vcmp.eq.s32.totalorder %v30, 16
    %s96 = sld [smem:[#allocation2 + $0x10]]
    %v97 = vstv %s96
    %v98 = vsel %vm95, %v97, %v94
    %vm99 = vcmp.eq.s32.totalorder %v30, 17
    %s100 = sld [smem:[#allocation2 + $0x11]]
    %v101 = vstv %s100
    %v102 = vsel %vm99, %v101, %v98
    %vm103 = vcmp.eq.s32.totalorder %v30, 18
    %s104 = sld [smem:[#allocation2 + $0x12]]
    %v105 = vstv %s104
    %v106 = vsel %vm103, %v105, %v102
    %vm107 = vcmp.eq.s32.totalorder %v30, 19
    %s108 = sld [smem:[#allocation2 + $0x13]]
    %v109 = vstv %s108
    %v110 = vsel %vm107, %v109, %v106
    %vm111 = vcmp.eq.s32.totalorder %v30, 20
    %s112 = sld [smem:[#allocation2 + $0x14]]
    %v113 = vstv %s112
    %v114 = vsel %vm111, %v113, %v110
    %vm115 = vcmp.eq.s32.totalorder %v30, 21
    %s116 = sld [smem:[#allocation2 + $0x15]]
    %v117 = vstv %s116
    %v118 = vsel %vm115, %v117, %v114
    %vm119 = vcmp.eq.s32.totalorder %v30, 22
    %s120 = sld [smem:[#allocation2 + $0x16]]
    %v121 = vstv %s120
    %v122 = vsel %vm119, %v121, %v118
    %vm123 = vcmp.eq.s32.totalorder %v30, 23
    %s124 = sld [smem:[#allocation2 + $0x17]]
    %v125 = vstv %s124
    %v126 = vsel %vm123, %v125, %v122
    %vm127 = vcmp.eq.s32.totalorder %v30, 24
    %s128 = sld [smem:[#allocation2 + $0x18]]
    %v129 = vstv %s128
    %v130 = vsel %vm127, %v129, %v126
    %vm131 = vcmp.eq.s32.totalorder %v30, 25
    %s132 = sld [smem:[#allocation2 + $0x19]]
    %v133 = vstv %s132
    %v134 = vsel %vm131, %v133, %v130
    %vm135 = vcmp.eq.s32.totalorder %v30, 26
    %s136 = sld [smem:[#allocation2 + $0x1a]]
    %v137 = vstv %s136
    %v138 = vsel %vm135, %v137, %v134
    %vm139 = vcmp.eq.s32.totalorder %v30, 27
    %s140 = sld [smem:[#allocation2 + $0x1b]]
    %v141 = vstv %s140
    %v142 = vsel %vm139, %v141, %v138
    %vm143 = vcmp.eq.s32.totalorder %v30, 28
    %s144 = sld [smem:[#allocation2 + $0x1c]]
    %v145 = vstv %s144
    %v146 = vsel %vm143, %v145, %v142
    %vm147 = vcmp.eq.s32.totalorder %v30, 29
    %s148 = sld [smem:[#allocation2 + $0x1d]]
    %v149 = vstv %s148
    %v150 = vsel %vm147, %v149, %v146
    %vm151 = vcmp.eq.s32.totalorder %v30, 30
    %s152 = sld [smem:[#allocation2 + $0x1e]]
    %v153 = vstv %s152
    %v154 = vsel %vm151, %v153, %v150
    %vm155 = vcmp.eq.s32.totalorder %v30, 31
    %s156 = sld [smem:[#allocation2 + $0x1f]]
    %v157 = vstv %s156
    %v158 = vsel %vm155, %v157, %v154
    %vm159 = vcmp.eq.s32.totalorder %v30, 32
    %s160 = sld [smem:[#allocation2 + $0x20]]
    %v161 = vstv %s160
    %v162 = vsel %vm159, %v161, %v158
    %vm163 = vcmp.eq.s32.totalorder %v30, 33
    %s164 = sld [smem:[#allocation2 + $0x21]]
    %v165 = vstv %s164
    %v166 = vsel %vm163, %v165, %v162
    %vm167 = vcmp.eq.s32.totalorder %v30, 34
    %s168 = sld [smem:[#allocation2 + $0x22]]
    %v169 = vstv %s168
    %v170 = vsel %vm167, %v169, %v166
    %vm171 = vcmp.eq.s32.totalorder %v30, 35
    %s172 = sld [smem:[#allocation2 + $0x23]]
    %v173 = vstv %s172
    %v174 = vsel %vm171, %v173, %v170
    %vm175 = vcmp.eq.s32.totalorder %v30, 36
    %s176 = sld [smem:[#allocation2 + $0x24]]
    %v177 = vstv %s176
    %v178 = vsel %vm175, %v177, %v174
    %vm179 = vcmp.eq.s32.totalorder %v30, 37
    %s180 = sld [smem:[#allocation2 + $0x25]]
    %v181 = vstv %s180
    %v182 = vsel %vm179, %v181, %v178
    %vm183 = vcmp.eq.s32.totalorder %v30, 38
    %s184 = sld [smem:[#allocation2 + $0x26]]
    %v185 = vstv %s184
    %v186 = vsel %vm183, %v185, %v182
    %vm187 = vcmp.eq.s32.totalorder %v30, 39
    %s188 = sld [smem:[#allocation2 + $0x27]]
    %v189 = vstv %s188
    %v190 = vsel %vm187, %v189, %v186
    %vm191 = vcmp.eq.s32.totalorder %v30, 40
    %s192 = sld [smem:[#allocation2 + $0x28]]
    %v193 = vstv %s192
    %v194 = vsel %vm191, %v193, %v190
    %vm195 = vcmp.eq.s32.totalorder %v30, 41
    %s196 = sld [smem:[#allocation2 + $0x29]]
    %v197 = vstv %s196
    %v198 = vsel %vm195, %v197, %v194
    %vm199 = vcmp.eq.s32.totalorder %v30, 42
    %s200 = sld [smem:[#allocation2 + $0x2a]]
    %v201 = vstv %s200
    %v202 = vsel %vm199, %v201, %v198
    %vm203 = vcmp.eq.s32.totalorder %v30, 43
    %s204 = sld [smem:[#allocation2 + $0x2b]]
    %v205 = vstv %s204
    %v206 = vsel %vm203, %v205, %v202
    %vm207 = vcmp.eq.s32.totalorder %v30, 44
    %s208 = sld [smem:[#allocation2 + $0x2c]]
    %v209 = vstv %s208
    %v210 = vsel %vm207, %v209, %v206
    %vm211 = vcmp.eq.s32.totalorder %v30, 45
    %s212 = sld [smem:[#allocation2 + $0x2d]]
    %v213 = vstv %s212
    %v214 = vsel %vm211, %v213, %v210
    %vm215 = vcmp.eq.s32.totalorder %v30, 46
    %s216 = sld [smem:[#allocation2 + $0x2e]]
    %v217 = vstv %s216
    %v218 = vsel %vm215, %v217, %v214
    %vm219 = vcmp.eq.s32.totalorder %v30, 47
    %s220 = sld [smem:[#allocation2 + $0x2f]]
    %v221 = vstv %s220
    %v222 = vsel %vm219, %v221, %v218
    %vm223 = vcmp.eq.s32.totalorder %v30, 48
    %s224 = sld [smem:[#allocation2 + $0x30]]
    %v225 = vstv %s224
    %v226 = vsel %vm223, %v225, %v222
    %vm227 = vcmp.eq.s32.totalorder %v30, 49
    %s228 = sld [smem:[#allocation2 + $0x31]]
    %v229 = vstv %s228
    %v230 = vsel %vm227, %v229, %v226
    %vm231 = vcmp.eq.s32.totalorder %v30, 50
    %s232 = sld [smem:[#allocation2 + $0x32]]
    %v233 = vstv %s232
    %v234 = vsel %vm231, %v233, %v230
    %vm235 = vcmp.eq.s32.totalorder %v30, 51
    %s236 = sld [smem:[#allocation2 + $0x33]]
    %v237 = vstv %s236
    %v238 = vsel %vm235, %v237, %v234
    %vm239 = vcmp.eq.s32.totalorder %v30, 52
    %s240 = sld [smem:[#allocation2 + $0x34]]
    %v241 = vstv %s240
    %v242 = vsel %vm239, %v241, %v238
    %vm243 = vcmp.eq.s32.totalorder %v30, 53
    %s244 = sld [smem:[#allocation2 + $0x35]]
    %v245 = vstv %s244
    %v246 = vsel %vm243, %v245, %v242
    %vm247 = vcmp.eq.s32.totalorder %v30, 54
    %s248 = sld [smem:[#allocation2 + $0x36]]
    %v249 = vstv %s248
    %v250 = vsel %vm247, %v249, %v246
    %vm251 = vcmp.eq.s32.totalorder %v30, 55
    %s252 = sld [smem:[#allocation2 + $0x37]]
    %v253 = vstv %s252
    %v254 = vsel %vm251, %v253, %v250
    %vm255 = vcmp.eq.s32.totalorder %v30, 56
    %s256 = sld [smem:[#allocation2 + $0x38]]
    %v257 = vstv %s256
    %v258 = vsel %vm255, %v257, %v254
    %vm259 = vcmp.eq.s32.totalorder %v30, 57
    %s260 = sld [smem:[#allocation2 + $0x39]]
    %v261 = vstv %s260
    %v262 = vsel %vm259, %v261, %v258
    %vm263 = vcmp.eq.s32.totalorder %v30, 58
    %s264 = sld [smem:[#allocation2 + $0x3a]]
    %v265 = vstv %s264
    %v266 = vsel %vm263, %v265, %v262
    %vm267 = vcmp.eq.s32.totalorder %v30, 59
    %s268 = sld [smem:[#allocation2 + $0x3b]]
    %v269 = vstv %s268
    %v270 = vsel %vm267, %v269, %v266
    %vm271 = vcmp.eq.s32.totalorder %v30, 60
    %s272 = sld [smem:[#allocation2 + $0x3c]]
    %v273 = vstv %s272
    %v274 = vsel %vm271, %v273, %v270
    %vm275 = vcmp.eq.s32.totalorder %v30, 61
    %s276 = sld [smem:[#allocation2 + $0x3d]]
    %v277 = vstv %s276
    %v278 = vsel %vm275, %v277, %v274
    %vm279 = vcmp.eq.s32.totalorder %v30, 62
    %s280 = sld [smem:[#allocation2 + $0x3e]]
    %v281 = vstv %s280
    %v282 = vsel %vm279, %v281, %v278
    %vm283 = vcmp.eq.s32.totalorder %v30, 63
    %s284 = sld [smem:[#allocation2 + $0x3f]]
    %v285 = vstv %s284
    %v286 = vsel %vm283, %v285, %v282
    %vm287 = vcmp.eq.s32.totalorder %v30, 64
    %s288 = sld [smem:[#allocation2 + $0x40]]
    %v289 = vstv %s288
    %v290 = vsel %vm287, %v289, %v286
    %vm291 = vcmp.eq.s32.totalorder %v30, 65
    %s292 = sld [smem:[#allocation2 + $0x41]]
    %v293 = vstv %s292
    %v294 = vsel %vm291, %v293, %v290
    %vm295 = vcmp.eq.s32.totalorder %v30, 66
    %s296 = sld [smem:[#allocation2 + $0x42]]
    %v297 = vstv %s296
    %v298 = vsel %vm295, %v297, %v294
    %vm299 = vcmp.eq.s32.totalorder %v30, 67
    %s300 = sld [smem:[#allocation2 + $0x43]]
    %v301 = vstv %s300
    %v302 = vsel %vm299, %v301, %v298
    %vm303 = vcmp.eq.s32.totalorder %v30, 68
    %s304 = sld [smem:[#allocation2 + $0x44]]
    %v305 = vstv %s304
    %v306 = vsel %vm303, %v305, %v302
    %vm307 = vcmp.eq.s32.totalorder %v30, 69
    %s308 = sld [smem:[#allocation2 + $0x45]]
    %v309 = vstv %s308
    %v310 = vsel %vm307, %v309, %v306
    %vm311 = vcmp.eq.s32.totalorder %v30, 70
    %s312 = sld [smem:[#allocation2 + $0x46]]
    %v313 = vstv %s312
    %v314 = vsel %vm311, %v313, %v310
    %vm315 = vcmp.eq.s32.totalorder %v30, 71
    %s316 = sld [smem:[#allocation2 + $0x47]]
    %v317 = vstv %s316
    %v318 = vsel %vm315, %v317, %v314
    %vm319 = vcmp.eq.s32.totalorder %v30, 72
    %s320 = sld [smem:[#allocation2 + $0x48]]
    %v321 = vstv %s320
    %v322 = vsel %vm319, %v321, %v318
    %vm323 = vcmp.eq.s32.totalorder %v30, 73
    %s324 = sld [smem:[#allocation2 + $0x49]]
    %v325 = vstv %s324
    %v326 = vsel %vm323, %v325, %v322
    %vm327 = vcmp.eq.s32.totalorder %v30, 74
    %s328 = sld [smem:[#allocation2 + $0x4a]]
    %v329 = vstv %s328
    %v330 = vsel %vm327, %v329, %v326
    %vm331 = vcmp.eq.s32.totalorder %v30, 75
    %s332 = sld [smem:[#allocation2 + $0x4b]]
    %v333 = vstv %s332
    %v334 = vsel %vm331, %v333, %v330
    %vm335 = vcmp.eq.s32.totalorder %v30, 76
    %s336 = sld [smem:[#allocation2 + $0x4c]]
    %v337 = vstv %s336
    %v338 = vsel %vm335, %v337, %v334
    %vm339 = vcmp.eq.s32.totalorder %v30, 77
    %s340 = sld [smem:[#allocation2 + $0x4d]]
    %v341 = vstv %s340
    %v342 = vsel %vm339, %v341, %v338
    %vm343 = vcmp.eq.s32.totalorder %v30, 78
    %s344 = sld [smem:[#allocation2 + $0x4e]]
    %v345 = vstv %s344
    %v346 = vsel %vm343, %v345, %v342
    %vm347 = vcmp.eq.s32.totalorder %v30, 79
    %s348 = sld [smem:[#allocation2 + $0x4f]]
    %v349 = vstv %s348
    %v350 = vsel %vm347, %v349, %v346
    %vm351 = vcmp.eq.s32.totalorder %v30, 80
    %s352 = sld [smem:[#allocation2 + $0x50]]
    %v353 = vstv %s352
    %v354 = vsel %vm351, %v353, %v350
    %vm355 = vcmp.eq.s32.totalorder %v30, 81
    %s356 = sld [smem:[#allocation2 + $0x51]]
    %v357 = vstv %s356
    %v358 = vsel %vm355, %v357, %v354
    %vm359 = vcmp.eq.s32.totalorder %v30, 82
    %s360 = sld [smem:[#allocation2 + $0x52]]
    %v361 = vstv %s360
    %v362 = vsel %vm359, %v361, %v358
    %vm363 = vcmp.eq.s32.totalorder %v30, 83
    %s364 = sld [smem:[#allocation2 + $0x53]]
    %v365 = vstv %s364
    %v366 = vsel %vm363, %v365, %v362
    %vm367 = vcmp.eq.s32.totalorder %v30, 84
    %s368 = sld [smem:[#allocation2 + $0x54]]
    %v369 = vstv %s368
    %v370 = vsel %vm367, %v369, %v366
    %vm371 = vcmp.eq.s32.totalorder %v30, 85
    %s372 = sld [smem:[#allocation2 + $0x55]]
    %v373 = vstv %s372
    %v374 = vsel %vm371, %v373, %v370
    %vm375 = vcmp.eq.s32.totalorder %v30, 86
    %s376 = sld [smem:[#allocation2 + $0x56]]
    %v377 = vstv %s376
    %v378 = vsel %vm375, %v377, %v374
    %vm379 = vcmp.eq.s32.totalorder %v30, 87
    %s380 = sld [smem:[#allocation2 + $0x57]]
    %v381 = vstv %s380
    %v382 = vsel %vm379, %v381, %v378
    %vm383 = vcmp.eq.s32.totalorder %v30, 88
    %s384 = sld [smem:[#allocation2 + $0x58]]
    %v385 = vstv %s384
    %v386 = vsel %vm383, %v385, %v382
    %vm387 = vcmp.eq.s32.totalorder %v30, 89
    %s388 = sld [smem:[#allocation2 + $0x59]]
    %v389 = vstv %s388
    %v390 = vsel %vm387, %v389, %v386
    %vm391 = vcmp.eq.s32.totalorder %v30, 90
    %s392 = sld [smem:[#allocation2 + $0x5a]]
    %v393 = vstv %s392
    %v394 = vsel %vm391, %v393, %v390
    %vm395 = vcmp.eq.s32.totalorder %v30, 91
    %s396 = sld [smem:[#allocation2 + $0x5b]]
    %v397 = vstv %s396
    %v398 = vsel %vm395, %v397, %v394
    %vm399 = vcmp.eq.s32.totalorder %v30, 92
    %s400 = sld [smem:[#allocation2 + $0x5c]]
    %v401 = vstv %s400
    %v402 = vsel %vm399, %v401, %v398
    %vm403 = vcmp.eq.s32.totalorder %v30, 93
    %s404 = sld [smem:[#allocation2 + $0x5d]]
    %v405 = vstv %s404
    %v406 = vsel %vm403, %v405, %v402
    %vm407 = vcmp.eq.s32.totalorder %v30, 94
    %s408 = sld [smem:[#allocation2 + $0x5e]]
    %v409 = vstv %s408
    %v410 = vsel %vm407, %v409, %v406
    %vm411 = vcmp.eq.s32.totalorder %v30, 95
    %s412 = sld [smem:[#allocation2 + $0x5f]]
    %v413 = vstv %s412
    %v414 = vsel %vm411, %v413, %v410
    %vm415 = vcmp.eq.s32.totalorder %v30, 96
    %s416 = sld [smem:[#allocation2 + $0x60]]
    %v417 = vstv %s416
    %v418 = vsel %vm415, %v417, %v414
    %vm419 = vcmp.eq.s32.totalorder %v30, 97
    %s420 = sld [smem:[#allocation2 + $0x61]]
    %v421 = vstv %s420
    %v422 = vsel %vm419, %v421, %v418
    %vm423 = vcmp.eq.s32.totalorder %v30, 98
    %s424 = sld [smem:[#allocation2 + $0x62]]
    %v425 = vstv %s424
    %v426 = vsel %vm423, %v425, %v422
    %vm427 = vcmp.eq.s32.totalorder %v30, 99
    %s428 = sld [smem:[#allocation2 + $0x63]]
    %v429 = vstv %s428
    %v430 = vsel %vm427, %v429, %v426
    %vm431 = vcmp.eq.s32.totalorder %v30, 100
    %s432 = sld [smem:[#allocation2 + $0x64]]
    %v433 = vstv %s432
    %v434 = vsel %vm431, %v433, %v430
    %435 = vst [vmem:[%s2] sm:$0xff] %v434
    // Predicated region
    $region14: #{_forward_impl.1} parent=1 // pred_check
      _
    $region15: #{_forward_impl.1} parent=1 // pred_check_branch
      %437 = sbr.rel (0) target = $region17
    $region16: #{_forward_impl.1} parent=1 // pred_region
      _
    $region17: #{_forward_impl.1} parent=1 // pred_fallthru
      _
    // Predicated region
    $region18: #{_forward_impl.1} parent=1 // pred_check
      _
    $region19: #{_forward_impl.1} parent=1 // pred_check_branch
      %439 = sbr.rel (0) target = $region21
    $region20: #{_forward_impl.1} parent=1 // pred_region
      _
    $region21: #{_forward_impl.1} parent=1 // pred_fallthru
      _
    %440 = vsyncpa [#allocation3], 1

</llo_original>
